<compile_context>
chip_gen: v5e
topology: v5e:2x2
jax: 0.10.0
libtpu: 0.0.40
codegen_flags: <defaults>
</compile_context>

<pallas_src>
import functools

import jax
import jax.numpy as jnp
from jax.experimental import pallas as pl
from jax.experimental.pallas import tpu as pltpu

LANES = 128
ACC_ROWS = 8            # each partial-sum block is one (8, 128) f32 vreg per quantity
MIN_GRID_STEPS = 4      # keep pipelining / megacore sharding for mid-sized inputs


def _round_up(x, m):
    return ((x + m - 1) // m) * m


def _cdiv(a, b):
    return -(-a // b)


def _sublane_multiple(dtype):
    size = jnp.dtype(dtype).itemsize
    if size >= 4:
        return 8
    if size == 2:
        return 16
    return 32


def _vmem_capacity_bytes():
    try:
        return int(pltpu.get_tpu_info().vmem_capacity_bytes)
    except Exception:
        return 64 * 1024 * 1024   # conservative (v7x per-TensorCore figure)


def _gt_aware_wmse_kernel(pred_ref, actual_ref, gt_ref, out_ref, *,
                          tile_rows, full_rows, last_lanes):
    """One grid step: fold a (tile_rows, 128) slab into an (8, 3*128) partial-sum block."""
    i = pl.program_id(0)
    last = pl.num_programs(0) - 1

    def emit(valid):
        pred = pred_ref[...].astype(jnp.float32)
        actual = actual_ref[...].astype(jnp.float32)
        gt = gt_ref[...].astype(jnp.float32)

        diff = actual - pred
        if valid is not None:
            diff = jnp.where(valid, diff, 0.0)          # invalid elems contribute 0
        sq = diff * diff

        positives = actual < 0.5                         # bool_positives
        if valid is not None:
            positives = jnp.logical_and(positives, valid)
        fp = jnp.logical_and(positives, pred >= 0.5)     # bool_false & bool_positives
        fp_f = fp.astype(jnp.float32)
        tp_f = positives.astype(jnp.float32) - fp_f      # ~bool_false & bool_positives
        fp_w = jnp.where(fp, gt, 0.0)                    # fp_mask * gt_error

        # (tile_rows,128) -> (8,128): pure VPU vreg adds over the major axis.
        def fold(x):
            return jnp.sum(x.reshape(tile_rows // ACC_ROWS, ACC_ROWS, LANES), axis=0)

        out_ref[:, 0 * LANES:1 * LANES] = fold(sq)
        out_ref[:, 1 * LANES:2 * LANES] = fold(fp_w)
        out_ref[:, 2 * LANES:3 * LANES] = fold(tp_f)

    # Interior tiles are always fully valid: no mask machinery at all.
    @pl.when(i != last)
    def _():
        emit(None)

    # Only the last tile can contain lane padding / OOB garbage -> mask it.
    @pl.when(i == last)
    def _():
        row = jax.lax.broadcasted_iota(jnp.int32, (tile_rows, 1), 0)
        lane = jax.lax.broadcasted_iota(jnp.int32, (1, LANES), 1)
        grow = i * tile_rows + row                       # global row index (no *128 -> no i32 overflow)
        valid = jnp.logical_or(
            grow < full_rows,
            jnp.logical_and(grow == full_rows, lane < last_lanes))
        emit(valid)


def gt_aware_weighted_mse_loss(pred, actual, gt_error, tolerance=None):
    """Scalar loss. pred/actual/gt_error must share a shape (any rank)."""
    del tolerance  # unused by the reference forward
    assert pred.shape == actual.shape == gt_error.shape
    n = pred.size
    rows = _cdiv(n, LANES)            # rows of the (rows, 128) view
    lane_pad = rows * LANES - n       # only ever < 128

    sub = max(_sublane_multiple(x.dtype) for x in (pred, actual, gt_error))

    vmem_cap = _vmem_capacity_bytes()
    if vmem_cap >= 96 * 1024 * 1024:            # v5e / v6e: 128 MiB VMEM per core
        max_tile_rows, vmem_limit = 8192, 96 * 1024 * 1024
    else:                                        # v7x (64 MiB / TC) or unknown
        max_tile_rows, vmem_limit = 4096, 48 * 1024 * 1024

    tile_rows = max(sub, _round_up(_cdiv(rows, MIN_GRID_STEPS), sub))
    tile_rows = min(tile_rows, max_tile_rows)
    num_tiles = _cdiv(rows, tile_rows)

    def to2d(x):
        x = x.reshape(-1)
        if lane_pad:  # pad only to the 128-lane boundary; value irrelevant (masked in-kernel)
            x = jnp.pad(x, (0, lane_pad))
        return x.reshape(rows, LANES)             # native dtype; cast happens in-kernel

    pred2d, actual2d, gt2d = to2d(pred), to2d(actual), to2d(gt_error)

    in_spec = pl.BlockSpec((tile_rows, LANES), lambda i: (i, 0))
    out_spec = pl.BlockSpec((ACC_ROWS, 3 * LANES), lambda i: (i, 0))
    part_shape = jax.ShapeDtypeStruct((num_tiles * ACC_ROWS, 3 * LANES), jnp.float32)

    in_bytes = n * sum(jnp.dtype(x.dtype).itemsize for x in (pred, actual, gt_error))
    out_bytes = num_tiles * ACC_ROWS * 3 * LANES * 4
    cost = pl.CostEstimate(flops=12 * n, transcendentals=0,
                           bytes_accessed=in_bytes + out_bytes)

    parts = pl.pallas_call(
        functools.partial(_gt_aware_wmse_kernel, tile_rows=tile_rows,
                          full_rows=n // LANES, last_lanes=n % LANES),
        out_shape=part_shape,
        grid_spec=pltpu.PrefetchScalarGridSpec(
            num_scalar_prefetch=0,
            grid=(num_tiles,),
            in_specs=[in_spec, in_spec, in_spec],
            out_specs=out_spec,
        ),
        compiler_params=pltpu.CompilerParams(
            # Note: on v7x, if profiling shows a single TensorCore running all
            # grid steps, switch this axis to pltpu.CORE_PARALLEL so each TC
            # streams half the rows (pure HBM-streaming kernel).
            dimension_semantics=("parallel",),
            vmem_limit_bytes=vmem_limit,
        ),
        cost_estimate=cost,
    )(pred2d, actual2d, gt2d)

    # Tiny final reduction + scalar combine (exactly the reference means).
    sums = jnp.sum(parts.reshape(-1, 3, LANES), axis=(0, 2))  # [sum(sq), sum(fp*gt), count(tp)]
    inv_n = jnp.float32(1.0 / n)
    squared_loss = sums[0] * inv_n
    false_positives_loss = sums[1] * inv_n
    true_positives_loss = sums[2] * inv_n * squared_loss * jnp.float32(-0.5)
    return squared_loss + false_positives_loss + true_positives_loss


class GTAwareWeightedMSELoss:
    """Ground-Truth Aware, Mean-Squared-Error Loss with weight (Pallas/TPU)."""

    def __init__(self, weight_fp=9.0):
        self.weight_fp = weight_fp  # kept for parity; unused in the reference forward

    def __call__(self, pred, actual, gt_error, tolerance):
        return gt_aware_weighted_mse_loss(pred, actual, gt_error, tolerance)


def _reference(pred, actual, gt_error):
    pred = pred.astype(jnp.float32)
    actual = actual.astype(jnp.float32)
    gt_error = gt_error.astype(jnp.float32)
    diff = actual - pred
    squared_loss = jnp.mean(diff ** 2)
    bool_positives = actual < 0.5
    bool_false = pred >= 0.5
    fp = (bool_false & bool_positives).astype(jnp.float32)
    false_positives_loss = jnp.mean(fp * gt_error)
    tp = (~bool_false & bool_positives).astype(jnp.float32)
    true_positives_loss = jnp.mean(tp * squared_loss * -0.5)
    return squared_loss + false_positives_loss + true_positives_loss


if __name__ == "__main__":
    key = jax.random.PRNGKey(0)
    loss_mod = GTAwareWeightedMSELoss(weight_fp=9.0)
    tolerance = jnp.float32(0.5)  # unused by the forward pass

    # 1) Aligned NCHW-like shape (2048 elems, multiple of 128 -> zero-copy path,
    #    multiple grid steps exercising the unmasked interior fast path).
    # 2) Ragged shape (1155 elems, not a multiple of 128) -> lane-boundary pad +
    #    masked last tile.
    # 3) bf16 inputs -> dtype-aware (16,128) sublane rounding, native-dtype DMA.
    cases = [((2, 4, 16, 16), jnp.float32),
             ((3, 5, 7, 11), jnp.float32),
             ((2, 4, 16, 16), jnp.bfloat16)]

    for shape, dtype in cases:
        k1, k2, k3, key = jax.random.split(key, 4)
        pred = jax.random.uniform(k1, shape, dtype=jnp.float32).astype(dtype)
        actual = jax.random.uniform(k2, shape, dtype=jnp.float32).astype(dtype)
        gt_error = (jax.random.uniform(k3, shape, dtype=jnp.float32) * 10.0).astype(dtype)

        loss = loss_mod(pred, actual, gt_error, tolerance)
        jax.block_until_ready(loss)

        ref = _reference(pred, actual, gt_error)
        assert jnp.allclose(loss, ref, rtol=1e-5, atol=1e-6), (shape, dtype, loss, ref)

    print("KERNEL_OK")
</pallas_src>

<mosaic_0001>
module attributes {stable_mosaic.version = 11 : i64} {
  func.func @_gt_aware_wmse_kernel(%arg0: i32, %arg1: memref<8x128xf32, #tpu.memory_space<vmem>>, %arg2: memref<8x128xf32, #tpu.memory_space<vmem>>, %arg3: memref<8x128xf32, #tpu.memory_space<vmem>>, %arg4: memref<8x384xf32, #tpu.memory_space<vmem>>) attributes {dimension_semantics = [#tpu.dimension_semantics<parallel>], iteration_bounds = array<i64: 2>, scalar_prefetch = 0 : i64, scratch_operands = 0 : i64, tpu.core_type = #tpu.core_type<tc>, window_params = [{transform_indices = @transform_0, window_bounds = array<i64: 8, 128>}, {transform_indices = @transform_1, window_bounds = array<i64: 8, 128>}, {transform_indices = @transform_2, window_bounds = array<i64: 8, 128>}, {transform_indices = @transform_3, window_bounds = array<i64: 8, 384>}]} {
    %c1_i32 = arith.constant 1 : i32
    %0 = arith.cmpi ne, %arg0, %c1_i32 : i32
    %1 = arith.extui %0 : i1 to i32
    %c0_i32 = arith.constant 0 : i32
    %2 = arith.cmpi ne, %1, %c0_i32 : i32
    scf.if %2 {
      %c0 = arith.constant 0 : index
      %c0_2 = arith.constant 0 : index
      %6 = vector.load %arg1[%c0, %c0_2] : memref<8x128xf32, #tpu.memory_space<vmem>>, vector<8x128xf32>
      %c0_3 = arith.constant 0 : index
      %c0_4 = arith.constant 0 : index
      %7 = vector.load %arg2[%c0_3, %c0_4] : memref<8x128xf32, #tpu.memory_space<vmem>>, vector<8x128xf32>
      %c0_5 = arith.constant 0 : index
      %c0_6 = arith.constant 0 : index
      %8 = vector.load %arg3[%c0_5, %c0_6] : memref<8x128xf32, #tpu.memory_space<vmem>>, vector<8x128xf32>
      %9 = arith.subf %7, %6 : vector<8x128xf32>
      %10 = arith.mulf %9, %9 : vector<8x128xf32>
      %cst = arith.constant 5.000000e-01 : f32
      %11 = vector.broadcast %cst : f32 to vector<8x128xf32>
      %12 = arith.cmpf olt, %7, %11 : vector<8x128xf32>
      %cst_7 = arith.constant 5.000000e-01 : f32
      %13 = vector.broadcast %cst_7 : f32 to vector<8x128xf32>
      %14 = arith.cmpf oge, %6, %13 : vector<8x128xf32>
      %15 = arith.andi %12, %14 : vector<8x128xi1>
      %16 = arith.extui %15 : vector<8x128xi1> to vector<8x128xi32>
      %17 = arith.sitofp %16 : vector<8x128xi32> to vector<8x128xf32>
      %18 = arith.extui %12 : vector<8x128xi1> to vector<8x128xi32>
      %19 = arith.sitofp %18 : vector<8x128xi32> to vector<8x128xf32>
      %20 = arith.subf %19, %17 : vector<8x128xf32>
      %cst_8 = arith.constant 0.000000e+00 : f32
      %21 = vector.broadcast %cst_8 : f32 to vector<8x128xf32>
      %22 = arith.select %15, %8, %21 : vector<8x128xi1>, vector<8x128xf32>
      %23 = vector.shape_cast %10 : vector<8x128xf32> to vector<1x8x128xf32>
      %cst_9 = arith.constant dense<0.000000e+00> : vector<8x128xf32>
      %24 = vector.multi_reduction <add>, %23, %cst_9 [0] : vector<1x8x128xf32> to vector<8x128xf32>
      %c0_10 = arith.constant 0 : index
      %c0_11 = arith.constant 0 : index
      %25 = vector.load %arg4[%c0_10, %c0_11] : memref<8x384xf32, #tpu.memory_space<vmem>>, vector<8x128xf32>
      tpu.vector_store %arg4[%c0_10, %c0_11], %24 {strides = array<i32>} : memref<8x384xf32, #tpu.memory_space<vmem>>, vector<8x128xf32>,
      %26 = vector.shape_cast %22 : vector<8x128xf32> to vector<1x8x128xf32>
      %cst_12 = arith.constant dense<0.000000e+00> : vector<8x128xf32>
      %27 = vector.multi_reduction <add>, %26, %cst_12 [0] : vector<1x8x128xf32> to vector<8x128xf32>
      %c0_13 = arith.constant 0 : index
      %c128 = arith.constant 128 : index
      %28 = vector.load %arg4[%c0_13, %c128] : memref<8x384xf32, #tpu.memory_space<vmem>>, vector<8x128xf32>
      tpu.vector_store %arg4[%c0_13, %c128], %27 {strides = array<i32>} : memref<8x384xf32, #tpu.memory_space<vmem>>, vector<8x128xf32>,
      %29 = vector.shape_cast %20 : vector<8x128xf32> to vector<1x8x128xf32>
      %cst_14 = arith.constant dense<0.000000e+00> : vector<8x128xf32>
      %30 = vector.multi_reduction <add>, %29, %cst_14 [0] : vector<1x8x128xf32> to vector<8x128xf32>
      %c0_15 = arith.constant 0 : index
      %c256 = arith.constant 256 : index
      %31 = vector.load %arg4[%c0_15, %c256] : memref<8x384xf32, #tpu.memory_space<vmem>>, vector<8x128xf32>
      tpu.vector_store %arg4[%c0_15, %c256], %30 {strides = array<i32>} : memref<8x384xf32, #tpu.memory_space<vmem>>, vector<8x128xf32>,
    } else {
    }
    %c1_i32_0 = arith.constant 1 : i32
    %3 = arith.cmpi eq, %arg0, %c1_i32_0 : i32
    %4 = arith.extui %3 : i1 to i32
    %c0_i32_1 = arith.constant 0 : i32
    %5 = arith.cmpi ne, %4, %c0_i32_1 : i32
    scf.if %5 {
      %6 = tpu.iota {dimensions = array<i32: 0>} : vector<8x1xi32>
      %7 = tpu.iota {dimensions = array<i32: 1>} : vector<1x128xi32>
      %c8_i32 = arith.constant 8 : i32
      %8 = arith.muli %arg0, %c8_i32 : i32
      %9 = vector.broadcast %8 : i32 to vector<8x1xi32>
      %10 = arith.addi %9, %6 : vector<8x1xi32>
      %c16_i32 = arith.constant 16 : i32
      %11 = vector.broadcast %c16_i32 : i32 to vector<8x1xi32>
      %12 = arith.cmpi slt, %10, %11 : vector<8x1xi32>
      %c16_i32_2 = arith.constant 16 : i32
      %13 = vector.broadcast %c16_i32_2 : i32 to vector<8x1xi32>
      %14 = arith.cmpi eq, %10, %13 : vector<8x1xi32>
      %c0_i32_3 = arith.constant 0 : i32
      %15 = vector.broadcast %c0_i32_3 : i32 to vector<1x128xi32>
      %16 = arith.cmpi slt, %7, %15 : vector<1x128xi32>
      %17 = vector.broadcast %14 : vector<8x1xi1> to vector<8x128xi1>
      %18 = vector.broadcast %16 : vector<1x128xi1> to vector<8x128xi1>
      %19 = arith.andi %17, %18 : vector<8x128xi1>
      %20 = vector.broadcast %12 : vector<8x1xi1> to vector<8x128xi1>
      %21 = arith.ori %20, %19 : vector<8x128xi1>
      %c0 = arith.constant 0 : index
      %c0_4 = arith.constant 0 : index
      %22 = vector.load %arg1[%c0, %c0_4] : memref<8x128xf32, #tpu.memory_space<vmem>>, vector<8x128xf32>
      %c0_5 = arith.constant 0 : index
      %c0_6 = arith.constant 0 : index
      %23 = vector.load %arg2[%c0_5, %c0_6] : memref<8x128xf32, #tpu.memory_space<vmem>>, vector<8x128xf32>
      %c0_7 = arith.constant 0 : index
      %c0_8 = arith.constant 0 : index
      %24 = vector.load %arg3[%c0_7, %c0_8] : memref<8x128xf32, #tpu.memory_space<vmem>>, vector<8x128xf32>
      %25 = arith.subf %23, %22 : vector<8x128xf32>
      %cst = arith.constant 0.000000e+00 : f32
      %26 = vector.broadcast %cst : f32 to vector<8x128xf32>
      %27 = arith.select %21, %25, %26 : vector<8x128xi1>, vector<8x128xf32>
      %28 = arith.mulf %27, %27 : vector<8x128xf32>
      %cst_9 = arith.constant 5.000000e-01 : f32
      %29 = vector.broadcast %cst_9 : f32 to vector<8x128xf32>
      %30 = arith.cmpf olt, %23, %29 : vector<8x128xf32>
      %31 = arith.andi %30, %21 : vector<8x128xi1>
      %cst_10 = arith.constant 5.000000e-01 : f32
      %32 = vector.broadcast %cst_10 : f32 to vector<8x128xf32>
      %33 = arith.cmpf oge, %22, %32 : vector<8x128xf32>
      %34 = arith.andi %31, %33 : vector<8x128xi1>
      %35 = arith.extui %34 : vector<8x128xi1> to vector<8x128xi32>
      %36 = arith.sitofp %35 : vector<8x128xi32> to vector<8x128xf32>
      %37 = arith.extui %31 : vector<8x128xi1> to vector<8x128xi32>
      %38 = arith.sitofp %37 : vector<8x128xi32> to vector<8x128xf32>
      %39 = arith.subf %38, %36 : vector<8x128xf32>
      %cst_11 = arith.constant 0.000000e+00 : f32
      %40 = vector.broadcast %cst_11 : f32 to vector<8x128xf32>
      %41 = arith.select %34, %24, %40 : vector<8x128xi1>, vector<8x128xf32>
      %42 = vector.shape_cast %28 : vector<8x128xf32> to vector<1x8x128xf32>
      %cst_12 = arith.constant dense<0.000000e+00> : vector<8x128xf32>
      %43 = vector.multi_reduction <add>, %42, %cst_12 [0] : vector<1x8x128xf32> to vector<8x128xf32>
      %c0_13 = arith.constant 0 : index
      %c0_14 = arith.constant 0 : index
      %44 = vector.load %arg4[%c0_13, %c0_14] : memref<8x384xf32, #tpu.memory_space<vmem>>, vector<8x128xf32>
      tpu.vector_store %arg4[%c0_13, %c0_14], %43 {strides = array<i32>} : memref<8x384xf32, #tpu.memory_space<vmem>>, vector<8x128xf32>,
      %45 = vector.shape_cast %41 : vector<8x128xf32> to vector<1x8x128xf32>
      %cst_15 = arith.constant dense<0.000000e+00> : vector<8x128xf32>
      %46 = vector.multi_reduction <add>, %45, %cst_15 [0] : vector<1x8x128xf32> to vector<8x128xf32>
      %c0_16 = arith.constant 0 : index
      %c128 = arith.constant 128 : index
      %47 = vector.load %arg4[%c0_16, %c128] : memref<8x384xf32, #tpu.memory_space<vmem>>, vector<8x128xf32>
      tpu.vector_store %arg4[%c0_16, %c128], %46 {strides = array<i32>} : memref<8x384xf32, #tpu.memory_space<vmem>>, vector<8x128xf32>,
      %48 = vector.shape_cast %39 : vector<8x128xf32> to vector<1x8x128xf32>
      %cst_17 = arith.constant dense<0.000000e+00> : vector<8x128xf32>
      %49 = vector.multi_reduction <add>, %48, %cst_17 [0] : vector<1x8x128xf32> to vector<8x128xf32>
      %c0_18 = arith.constant 0 : index
      %c256 = arith.constant 256 : index
      %50 = vector.load %arg4[%c0_18, %c256] : memref<8x384xf32, #tpu.memory_space<vmem>>, vector<8x128xf32>
      tpu.vector_store %arg4[%c0_18, %c256], %49 {strides = array<i32>} : memref<8x384xf32, #tpu.memory_space<vmem>>, vector<8x128xf32>,
    } else {
    }
    return
  }
  func.func @transform_0(%arg0: i32) -> (i32, i32) {
    %c0_i32 = arith.constant 0 : i32
    %c0_i32_0 = arith.constant 0 : i32
    return %arg0, %c0_i32 : i32, i32
  }
  func.func @transform_1(%arg0: i32) -> (i32, i32) {
    %c0_i32 = arith.constant 0 : i32
    %c0_i32_0 = arith.constant 0 : i32
    return %arg0, %c0_i32 : i32, i32
  }
  func.func @transform_2(%arg0: i32) -> (i32, i32) {
    %c0_i32 = arith.constant 0 : i32
    %c0_i32_0 = arith.constant 0 : i32
    return %arg0, %c0_i32 : i32, i32
  }
  func.func @transform_3(%arg0: i32) -> (i32, i32) {
    %c0_i32 = arith.constant 0 : i32
    %c0_i32_0 = arith.constant 0 : i32
    return %arg0, %c0_i32 : i32, i32
  }
}

</mosaic_0001>

<llo_original>
// kernel: tpu_custom_call.1
$region0: #{tpu_custom_call.1}
  #allocation0 [shape = 'u32[]', space=smem, size = 0x4, offset = 0x4, fixed_abs, tag = 'smem constant byte address 0x4 - core index']
  #allocation1 [shape = 'u32[72,128]{1,0:T(1,128)}', space=vmem, size = 0x9000, scoped, tag = 'internal scratch']
  %s0 = inlined_call_operand.hbm [shape: f32[16,128], index: 0, kind: input, shape index: {}]
  %s1 = inlined_call_operand.hbm [shape: f32[16,128], index: 1, kind: input, shape index: {}]
  %s2 = inlined_call_operand.hbm [shape: f32[16,128], index: 2, kind: input, shape index: {}]
  %s3 = inlined_call_operand.hbm [shape: f32[16,384], index: 3, kind: output, shape index: {}]
  %s4 = sld [smem:[#allocation0]]
  $region65: #{tpu_custom_call.1} parent=0
    _
  %s6 = ssub.s32 1, %s4
  %s7 = scalar_select 0, %s6, %s4
  $region1: #{tpu_custom_call.1} parent=0
    #allocation2 [shape = 'u8[8192]{0}', space=vmem, size = 0x2000, scoped, tag = 'input window, operand 0']
    #allocation3 [shape = 's32[2]{0}', space=sflag, size = 0x8, scoped, tag = 'scoped memory for tpu_custom_call.1']
    #allocation4 [shape = 's32[2]{0}', space=sflag, size = 0x8, scoped, tag = 'scoped memory for tpu_custom_call.1']
    #allocation5 [shape = 'u8[8192]{0}', space=vmem, size = 0x2000, scoped, tag = 'input window, operand 1']
    #allocation6 [shape = 's32[2]{0}', space=sflag, size = 0x8, scoped, tag = 'scoped memory for tpu_custom_call.1']
    #allocation7 [shape = 'u8[8192]{0}', space=vmem, size = 0x2000, scoped, tag = 'input window, operand 2']
    #allocation8 [shape = 'u8[24576]{0}', space=vmem, size = 0x6000, scoped, tag = 'output window, operand 0']
    %8 = vsyncpa [#allocation3], 0
    %s9 = scalar_lea.sflag [#allocation3], 1
    %10 = vsyncpa %s9, 0
    %11 = vsyncpa [#allocation6], 0
    %s12 = scalar_lea.sflag [#allocation6], 1
    %13 = vsyncpa %s12, 0
    %14 = vsyncpa [#allocation4], 0
    %s15 = scalar_lea.sflag [#allocation4], 1
    %16 = vsyncpa %s15, 0
    loop: start=0, step=1, limit=4
    $region2: #{tpu_custom_call.1} parent=1 // loop_pre_header
      _
    $region3: #{tpu_custom_call.1} parent=1 // loop_header
      %s18 = sphi 0, %s22
      %p19 = scmp.ge.s32.totalorder %s18, 4
      %s28 = sphi 0, %s30
      %s31 = sphi 0, %s28
      %s32 = sphi 0, %s31
      %s48 = sphi 0, %s32
      %s54 = sphi 0, %s56
      %s57 = sphi 0, %s54
      %s58 = sphi 0, %s57
      %s74 = sphi 0, %s58
      %s80 = sphi 0, %s82
      %s83 = sphi 0, %s80
      %s84 = sphi 0, %s83
      %s100 = sphi 0, %s84
      %s106 = sphi 0, %s108
      %s109 = sphi 0, %s106
      %s110 = sphi 0, %s109
      %s126 = sphi 0, %s110
    $region4: #{tpu_custom_call.1} parent=1 // loop_header_branch
      %21 = sbr.rel (%p19) target = $region8
    $region5: #{tpu_custom_call.1} parent=1 // loop_body
      %s23 = ssub.s32 %s18, 1
      %s24 = ssub.s32 %s18, 2
      %s25 = sadd.s32 %s18, 1
      %s26 = ssub.s32 %s18, %s25
      %p27 = scmp.eq.s32.totalorder %s26, 0
      %s29 = sadd.s32 %s28, 1
      %s30 = scalar_select %p27, %s28, %s29
      %p33 = pneg %p27
      %p34 = scmp.eq.s32.totalorder %s18, 1
      %p35 = por %p33, %p34
      %p36 = scmp.ne.s32.totalorder %s28, %s31
      %p37 = scmp.eq.s32.totalorder %s18, 0
      %p38 = por %p36, %p37
      %p39 = scmp.ne.s32.totalorder %s28, %s31
      %p40 = scmp.eq.s32.totalorder %s23, 1
      %p41 = por %p39, %p40
      %p42 = scmp.ne.s32.totalorder %s31, %s32
      %p43 = scmp.eq.s32.totalorder %s23, 0
      %p44 = por %p42, %p43
      %p45 = scmp.ne.s32.totalorder %s31, %s32
      %p46 = scmp.eq.s32.totalorder %s24, 1
      %p47 = por %p45, %p46
      %p49 = scmp.ne.s32.totalorder %s32, %s48
      %p50 = scmp.eq.s32.totalorder %s24, 0
      %p51 = por %p49, %p50
      %s52 = ssub.s32 %s18, %s25
      %p53 = scmp.eq.s32.totalorder %s52, 0
      %s55 = sadd.s32 %s54, 1
      %s56 = scalar_select %p53, %s54, %s55
      %p59 = pneg %p53
      %p60 = scmp.eq.s32.totalorder %s18, 1
      %p61 = por %p59, %p60
      %p62 = scmp.ne.s32.totalorder %s54, %s57
      %p63 = scmp.eq.s32.totalorder %s18, 0
      %p64 = por %p62, %p63
      %p65 = scmp.ne.s32.totalorder %s54, %s57
      %p66 = scmp.eq.s32.totalorder %s23, 1
      %p67 = por %p65, %p66
      %p68 = scmp.ne.s32.totalorder %s57, %s58
      %p69 = scmp.eq.s32.totalorder %s23, 0
      %p70 = por %p68, %p69
      %p71 = scmp.ne.s32.totalorder %s57, %s58
      %p72 = scmp.eq.s32.totalorder %s24, 1
      %p73 = por %p71, %p72
      %p75 = scmp.ne.s32.totalorder %s58, %s74
      %p76 = scmp.eq.s32.totalorder %s24, 0
      %p77 = por %p75, %p76
      %s78 = ssub.s32 %s18, %s25
      %p79 = scmp.eq.s32.totalorder %s78, 0
      %s81 = sadd.s32 %s80, 1
      %s82 = scalar_select %p79, %s80, %s81
      %p85 = pneg %p79
      %p86 = scmp.eq.s32.totalorder %s18, 1
      %p87 = por %p85, %p86
      %p88 = scmp.ne.s32.totalorder %s80, %s83
      %p89 = scmp.eq.s32.totalorder %s18, 0
      %p90 = por %p88, %p89
      %p91 = scmp.ne.s32.totalorder %s80, %s83
      %p92 = scmp.eq.s32.totalorder %s23, 1
      %p93 = por %p91, %p92
      %p94 = scmp.ne.s32.totalorder %s83, %s84
      %p95 = scmp.eq.s32.totalorder %s23, 0
      %p96 = por %p94, %p95
      %p97 = scmp.ne.s32.totalorder %s83, %s84
      %p98 = scmp.eq.s32.totalorder %s24, 1
      %p99 = por %p97, %p98
      %p101 = scmp.ne.s32.totalorder %s84, %s100
      %p102 = scmp.eq.s32.totalorder %s24, 0
      %p103 = por %p101, %p102
      %s104 = ssub.s32 %s18, %s25
      %p105 = scmp.eq.s32.totalorder %s104, 0
      %s107 = sadd.s32 %s106, 1
      %s108 = scalar_select %p105, %s106, %s107
      %p111 = pneg %p105
      %p112 = scmp.eq.s32.totalorder %s18, 1
      %p113 = por %p111, %p112
      %p114 = scmp.ne.s32.totalorder %s106, %s109
      %p115 = scmp.eq.s32.totalorder %s18, 0
      %p116 = por %p114, %p115
      %p117 = scmp.ne.s32.totalorder %s106, %s109
      %p118 = scmp.eq.s32.totalorder %s23, 1
      %p119 = por %p117, %p118
      %p120 = scmp.ne.s32.totalorder %s109, %s110
      %p121 = scmp.eq.s32.totalorder %s23, 0
      %p122 = por %p120, %p121
      %p123 = scmp.ne.s32.totalorder %s109, %s110
      %p124 = scmp.eq.s32.totalorder %s24, 1
      %p125 = por %p123, %p124
      %p127 = scmp.ne.s32.totalorder %s110, %s126
      %p128 = scmp.eq.s32.totalorder %s24, 0
      %p129 = por %p127, %p128
      %p130 = scmp.le.s32.totalorder 1, %s18
      %p131 = scmp.lt.s32.totalorder %s18, 3
      %p132 = pnand %p130, %p131
      %p133 = pneg %p132
      // Predicated region
      $region9: #{tpu_custom_call.1} parent=5 // pred_check
        _
      $region10: #{tpu_custom_call.1} parent=5 // pred_check_branch
        %135 = sbr.rel (%p132) target = $region12
      $region11: #{tpu_custom_call.1} parent=5 // pred_region
        %s136 = ssub.s32 %s18, 1
      $region12: #{tpu_custom_call.1} parent=5 // pred_fallthru
        _
      %p137 = scmp.lt.s32.totalorder %s18, 2
      // Predicated region
      $region13: #{tpu_custom_call.1} parent=5 // pred_check
        %p138 = pneg %p137
      $region14: #{tpu_custom_call.1} parent=5 // pred_check_branch
        %140 = sbr.rel (%p138) target = $region16
      $region15: #{tpu_custom_call.1} parent=5 // pred_region
        // Predicated region
        $region17: #{tpu_custom_call.1} parent=15 // pred_check
          %p141 = pneg %p38
        $region18: #{tpu_custom_call.1} parent=15 // pred_check_branch
          %143 = sbr.rel (%p141) target = $region20
        $region19: #{tpu_custom_call.1} parent=15 // pred_region
          %s144 = sand.u32 %s28, 1
          %s145 = scalar_lea.sflag [#allocation3], %s144
          %s146 = sand.u32 %s28, 1
          %s147 = smul.addr %s146, 8
          %s148 = scalar_lea.vmem [#allocation2], %s147
          %150 = vsyncadd %s145, 0
          %s151 = smul.addr %s18, 8
          %s152 = scalar_lea.hbm %s0, %s151
          %s154 = sshll.u32 %s152, 4
          %s155 = int_to_ptr.hbm [resolvable:$true] %s154
          %s156 = sshll.u32 %s148, 4
          %s157 = int_to_ptr.vmem [resolvable:$true] %s156
          %159 = dma.hbm_to_vmem [thread:$0]  %s155, 128, %s157, %s145
        $region20: #{tpu_custom_call.1} parent=15 // pred_fallthru
          _
        // Predicated region
        $region21: #{tpu_custom_call.1} parent=15 // pred_check
          %p160 = pneg %p64
        $region22: #{tpu_custom_call.1} parent=15 // pred_check_branch
          %162 = sbr.rel (%p160) target = $region24
        $region23: #{tpu_custom_call.1} parent=15 // pred_region
          %s163 = sand.u32 %s18, 1
          %s164 = scalar_lea.sflag [#allocation6], %s163
          %s165 = sand.u32 %s54, 1
          %s166 = smul.addr %s165, 8
          %s167 = scalar_lea.vmem [#allocation5], %s166
          %169 = vsyncadd %s164, 0
          %s170 = smul.addr %s18, 8
          %s171 = scalar_lea.hbm %s1, %s170
          %s173 = sshll.u32 %s171, 4
          %s174 = int_to_ptr.hbm [resolvable:$true] %s173
          %s175 = sshll.u32 %s167, 4
          %s176 = int_to_ptr.vmem [resolvable:$true] %s175
          %178 = dma.hbm_to_vmem [thread:$0]  %s174, 128, %s176, %s164
        $region24: #{tpu_custom_call.1} parent=15 // pred_fallthru
          _
        // Predicated region
        $region25: #{tpu_custom_call.1} parent=15 // pred_check
          %p179 = pneg %p90
        $region26: #{tpu_custom_call.1} parent=15 // pred_check_branch
          %181 = sbr.rel (%p179) target = $region28
        $region27: #{tpu_custom_call.1} parent=15 // pred_region
          %s182 = sand.u32 %s18, 1
          %s183 = scalar_lea.sflag [#allocation6], %s182
          %s184 = sand.u32 %s80, 1
          %s185 = smul.addr %s184, 8
          %s186 = scalar_lea.vmem [#allocation7], %s185
          %188 = vsyncadd %s183, 0
          %s189 = smul.addr %s18, 8
          %s190 = scalar_lea.hbm %s2, %s189
          %s192 = sshll.u32 %s190, 4
          %s193 = int_to_ptr.hbm [resolvable:$true] %s192
          %s194 = sshll.u32 %s186, 4
          %s195 = int_to_ptr.vmem [resolvable:$true] %s194
          %197 = dma.hbm_to_vmem [thread:$0]  %s193, 128, %s195, %s183
        $region28: #{tpu_custom_call.1} parent=15 // pred_fallthru
          _
      $region16: #{tpu_custom_call.1} parent=5 // pred_fallthru
        _
      %p198 = scmp.le.s32.totalorder 1, %s18
      %p199 = scmp.lt.s32.totalorder %s18, 3
      %p200 = pnand %p198, %p199
      %p201 = pneg %p200
      // Predicated region
      $region29: #{tpu_custom_call.1} parent=5 // pred_check
        _
      $region30: #{tpu_custom_call.1} parent=5 // pred_check_branch
        %203 = sbr.rel (%p200) target = $region32
      $region31: #{tpu_custom_call.1} parent=5 // pred_region
        %s204 = ssub.s32 %s18, 1
        %s205 = sand.u32 %s31, 1
        %s206 = scalar_lea.sflag [#allocation3], %s205
        %s207 = sand.u32 %s31, 1
        %s208 = smul.addr %s207, 8
        %s209 = scalar_lea.vmem [#allocation2], %s208
        // Predicated region
        $region33: #{tpu_custom_call.1} parent=31 // pred_check
          %p210 = pneg %p44
        $region34: #{tpu_custom_call.1} parent=31 // pred_check_branch
          %212 = sbr.rel (%p210) target = $region36
        $region35: #{tpu_custom_call.1} parent=31 // pred_region
          %214 = dma.done %s206, 128
        $region36: #{tpu_custom_call.1} parent=31 // pred_fallthru
          _
        %s215 = sand.u32 %s23, 1
        %s216 = scalar_lea.sflag [#allocation6], %s215
        %s217 = sand.u32 %s57, 1
        %s218 = smul.addr %s217, 8
        %s219 = scalar_lea.vmem [#allocation5], %s218
        // Predicated region
        $region37: #{tpu_custom_call.1} parent=31 // pred_check
          %p220 = pneg %p70
        $region38: #{tpu_custom_call.1} parent=31 // pred_check_branch
          %222 = sbr.rel (%p220) target = $region40
        $region39: #{tpu_custom_call.1} parent=31 // pred_region
          %224 = dma.done %s216, 128
        $region40: #{tpu_custom_call.1} parent=31 // pred_fallthru
          _
        %s225 = sand.u32 %s23, 1
        %s226 = scalar_lea.sflag [#allocation6], %s225
        %s227 = sand.u32 %s83, 1
        %s228 = smul.addr %s227, 8
        %s229 = scalar_lea.vmem [#allocation7], %s228
        // Predicated region
        $region41: #{tpu_custom_call.1} parent=31 // pred_check
          %p230 = pneg %p96
        $region42: #{tpu_custom_call.1} parent=31 // pred_check_branch
          %232 = sbr.rel (%p230) target = $region44
        $region43: #{tpu_custom_call.1} parent=31 // pred_region
          %234 = dma.done %s226, 128
        $region44: #{tpu_custom_call.1} parent=31 // pred_fallthru
          _
        %s235 = sand.u32 %s31, 1
        %s236 = scalar_lea.sflag [#allocation3], %s235
        %s237 = sand.u32 %s31, 1
        %s238 = smul.addr %s237, 8
        %s239 = scalar_lea.vmem [#allocation2], %s238
        %p240 = pneg %p44
        %p241 = pneg %p41
        %s242 = sand.u32 %s23, 1
        %s243 = scalar_lea.sflag [#allocation6], %s242
        %s244 = sand.u32 %s57, 1
        %s245 = smul.addr %s244, 8
        %s246 = scalar_lea.vmem [#allocation5], %s245
        %p247 = pneg %p70
        %p248 = pneg %p67
        %s249 = sand.u32 %s23, 1
        %s250 = scalar_lea.sflag [#allocation6], %s249
        %s251 = sand.u32 %s83, 1
        %s252 = smul.addr %s251, 8
        %s253 = scalar_lea.vmem [#allocation7], %s252
        %p254 = pneg %p96
        %p255 = pneg %p93
        %p256 = pneg %p122
        %p257 = pneg %p119
        %s258 = sand.u32 %s109, 1
        %s259 = scalar_lea.sflag [#allocation4], %s258
        %s260 = sand.u32 %s109, 1
        %s261 = smul.addr %s260, 24
        %s262 = scalar_lea.vmem [#allocation8], %s261
        %p263 = scmp.ne.s32.totalorder %s23, 1
        // Predicated region
        $region45: #{tpu_custom_call.1} parent=31 // pred_check
          %p264 = pneg %p263
        $region46: #{tpu_custom_call.1} parent=31 // pred_check_branch
          %266 = sbr.rel (%p264) target = $region48
        $region47: #{tpu_custom_call.1} parent=31 // pred_region
          %v267 = vld [vmem:[%s209] sm:$0xff]
          %v268 = vld [vmem:[%s219] sm:$0xff]
          %v269 = vld [vmem:[%s229] sm:$0xff]
          %v270 = vsub.f32 %v268, %v267
          %v271 = vmul.f32 %v270, %v270
          %vm272 = vcmp.lt.f32.partialorder %v268, 0.5
          %vm273 = vcmp.ge.f32.partialorder %v267, 0.5
          %vm274 = vmand %vm272, %vm273
          %v275 = vsel %vm274, 1, 0
          %v276 = vcvt.s32.f32 %v275
          %v277 = vsel %vm272, 1, 0
          %v278 = vcvt.s32.f32 %v277
          %v279 = vsub.f32 %v278, %v276
          %v280 = vsel %vm274, %v269, 0.0
          %v281 = vadd.f32 %v271, 0.0
          %282 = vst [vmem:[%s262] sm:$0xff] %v281
          %v283 = vadd.f32 %v280, 0.0
          %284 = vst [vmem:[%s262 + $0x8] sm:$0xff] %v283
          %v285 = vadd.f32 %v279, 0.0
          %286 = vst [vmem:[%s262 + $0x10] sm:$0xff] %v285
        $region48: #{tpu_custom_call.1} parent=31 // pred_fallthru
          _
        %p287 = scmp.eq.s32.totalorder %s23, 1
        // Predicated region
        $region49: #{tpu_custom_call.1} parent=31 // pred_check
          %p288 = pneg %p287
        $region50: #{tpu_custom_call.1} parent=31 // pred_check_branch
          %290 = sbr.rel (%p288) target = $region52
        $region51: #{tpu_custom_call.1} parent=31 // pred_region
          %v291 = vlaneseq
          %v292 = vshrl.u32 %v291, 7
          %v293 = vlaneseq
          %v294 = vand.u32 %v293, 127
          %s295 = smul.u32 %s23, 8
          %v296 = vstv %s295
          %v297 = vadd.s32 %v296, %v292
          %vm298 = vcmp.lt.s32.totalorder %v297, 16
          %vm299 = vcmp.eq.s32.totalorder %v297, 16
          %vm300 = vcmp.lt.s32.totalorder %v294, 0
          %v301 = vsel %vm299, 1, 0
          %vm302 = vcmp.eq.s32.totalorder %v301, 1
          %v303 = vsel %vm300, 1, 0
          %vm304 = vcmp.eq.s32.totalorder %v303, 1
          %vm305 = vmand %vm302, %vm304
          %v306 = vsel %vm298, 1, 0
          %vm307 = vcmp.eq.s32.totalorder %v306, 1
          %vm308 = vmor %vm307, %vm305
          %v309 = vld [vmem:[%s209] sm:$0xff]
          %v310 = vld [vmem:[%s219] sm:$0xff]
          %v311 = vld [vmem:[%s229] sm:$0xff]
          %v312 = vsub.f32 %v310, %v309
          %v313 = vsel %vm308, %v312, 0.0
          %v314 = vmul.f32 %v313, %v313
          %vm315 = vcmp.lt.f32.partialorder %v310, 0.5
          %vm316 = vmand %vm315, %vm308
          %vm317 = vcmp.ge.f32.partialorder %v309, 0.5
          %vm318 = vmand %vm316, %vm317
          %v319 = vsel %vm318, 1, 0
          %v320 = vcvt.s32.f32 %v319
          %v321 = vsel %vm316, 1, 0
          %v322 = vcvt.s32.f32 %v321
          %v323 = vsub.f32 %v322, %v320
          %v324 = vsel %vm318, %v311, 0.0
          %v325 = vadd.f32 %v314, 0.0
          %326 = vst [vmem:[%s262] sm:$0xff] %v325
          %v327 = vadd.f32 %v324, 0.0
          %328 = vst [vmem:[%s262 + $0x8] sm:$0xff] %v327
          %v329 = vadd.f32 %v323, 0.0
          %330 = vst [vmem:[%s262 + $0x10] sm:$0xff] %v329
        $region52: #{tpu_custom_call.1} parent=31 // pred_fallthru
          _
        %s331 = sand.u32 %s109, 1
        %s332 = scalar_lea.sflag [#allocation4], %s331
        %s333 = sand.u32 %s109, 1
        %s334 = smul.addr %s333, 24
        %s335 = scalar_lea.vmem [#allocation8], %s334
        // Predicated region
        $region53: #{tpu_custom_call.1} parent=31 // pred_check
          %p336 = pneg %p119
        $region54: #{tpu_custom_call.1} parent=31 // pred_check_branch
          %338 = sbr.rel (%p336) target = $region56
        $region55: #{tpu_custom_call.1} parent=31 // pred_region
          %340 = vsyncadd %s332, 0
          %s341 = smul.addr %s23, 3
          %s342 = smul.addr %s341, 8
          %s343 = scalar_lea.hbm %s3, %s342
          %s345 = sshll.u32 %s335, 4
          %s346 = int_to_ptr.vmem [resolvable:$true] %s345
          %s347 = sshll.u32 %s343, 4
          %s348 = int_to_ptr.hbm [resolvable:$true] %s347
          %350 = dma.vmem_to_hbm [thread:$0]  %s346, 384, %s348, %s332
        $region56: #{tpu_custom_call.1} parent=31 // pred_fallthru
          _
      $region32: #{tpu_custom_call.1} parent=5 // pred_fallthru
        _
      %p351 = scmp.le.s32.totalorder 2, %s18
      // Predicated region
      $region57: #{tpu_custom_call.1} parent=5 // pred_check
        %p352 = pneg %p351
      $region58: #{tpu_custom_call.1} parent=5 // pred_check_branch
        %354 = sbr.rel (%p352) target = $region60
      $region59: #{tpu_custom_call.1} parent=5 // pred_region
        %s355 = ssub.s32 %s18, 2
        // Predicated region
        $region61: #{tpu_custom_call.1} parent=59 // pred_check
          %p356 = pneg %p125
        $region62: #{tpu_custom_call.1} parent=59 // pred_check_branch
          %358 = sbr.rel (%p356) target = $region64
        $region63: #{tpu_custom_call.1} parent=59 // pred_region
          %s359 = sand.u32 %s110, 1
          %s360 = scalar_lea.sflag [#allocation4], %s359
          %s361 = sand.u32 %s110, 1
          %s362 = smul.addr %s361, 24
          %s363 = scalar_lea.vmem [#allocation8], %s362
          %365 = dma.done %s360, 384
        $region64: #{tpu_custom_call.1} parent=59 // pred_fallthru
          _
      $region60: #{tpu_custom_call.1} parent=5 // pred_fallthru
        _
    $region6: #{tpu_custom_call.1} parent=1 // loop_footer
      %s22 = sadd.s32 1, %s18
    $region7: #{tpu_custom_call.1} parent=1 // loop_footer_branch
      %17 = sbr.rel target = $region3
    $region8: #{tpu_custom_call.1} parent=1 // loop_exit
      _
    %366 = vsyncpa [#allocation3], 1
    %s367 = scalar_lea.sflag [#allocation3], 1
    %368 = vsyncpa %s367, 1
    %369 = vsyncpa [#allocation6], 1
    %s370 = scalar_lea.sflag [#allocation6], 1
    %371 = vsyncpa %s370, 1
    %372 = vsyncpa [#allocation4], 1
    %s373 = scalar_lea.sflag [#allocation4], 1
    %374 = vsyncpa %s373, 1

</llo_original>
